<compile_context>
chip_gen: v5e
topology: v5e:2x2
jax: 0.10.0
libtpu: 0.0.40
codegen_flags: <defaults>
</compile_context>

<pallas_src>
import functools

import jax
import jax.numpy as jnp
import numpy as np
from jax import lax
from jax.experimental import pallas as pl
from jax.experimental.pallas import tpu as pltpu

BN_EPS = 1e-5
NEG_SLOPE = 0.2


def _round_up(x, m):
    return (x + m - 1) // m * m


@functools.lru_cache(maxsize=1)
def _device_defaults():
    """Returns (max_tile_m, vmem_limit_bytes) for the local TPU generation."""
    try:
        kind = jax.devices()[0].device_kind.lower()
    except Exception:  # defensive: fall back to conservative settings
        kind = ""
    if "v2" in kind or "v3" in kind:      # 16 MiB VMEM parts
        return 256, 12 * 2**20
    if "v7" in kind or "7x" in kind:      # 64 MiB physical VMEM per TC
        return 512, 40 * 2**20
    return 1024, 64 * 2**20               # v4/v5e/v5p/v6e: 128 MiB physical


def _pass1_vmem_bytes(tile_m, tile_k, c_y, y_itemsize, single_buf_w):
    patches = 2 * tile_m * tile_k * 2                        # bf16, double-buffered
    weights = (1 if single_buf_w else 2) * tile_k * c_y * 2  # bf16
    y_out = 2 * tile_m * c_y * y_itemsize                    # double-buffered out
    stats = 2 * 2 * 8 * c_y * 4                              # sum + sumsq partials
    acc = tile_m * c_y * 4                                   # f32 accumulator scratch
    return patches + weights + y_out + stats + acc


def _conv_stats_kernel(p_ref, w_ref, y_ref, sum_ref, sq_ref, acc_ref):
    # p_ref:   (TILE_M, TILE_K) bf16 im2col patches
    # w_ref:   (TILE_K, C_Y)    bf16 flattened conv weights
    # y_ref:   (TILE_M, C_Y)    pre-BN conv output (bf16 by default)
    # sum_ref: (8, C_Y) f32     per-tile, sublane-depth partial sum
    # sq_ref:  (8, C_Y) f32     per-tile, sublane-depth partial sum of squares
    # acc_ref: (TILE_M, C_Y)    f32 accumulator over the K grid axis
    kk = pl.program_id(1)

    @pl.when(kk == 0)
    def _():
        acc_ref[...] = jnp.zeros_like(acc_ref)

    acc_ref[...] += jnp.dot(p_ref[...], w_ref[...],
                            preferred_element_type=jnp.float32)

    @pl.when(kk == pl.num_programs(1) - 1)
    def _():
        yq = acc_ref[...].astype(y_ref.dtype)     # bf16 rounding (or no-op for f32)
        y_ref[...] = yq
        yf = yq.astype(jnp.float32)               # stats describe the stored y
        # Sublane-depth partial stats: reduce only over the leading axis so the
        # per-tile work stays on the VPU; the final 8-row (and cross-tile)
        # reduce happens once in the tiny XLA combine.
        y3 = yf.reshape(yf.shape[0] // 8, 8, yf.shape[1])
        sum_ref[...] = jnp.sum(y3, axis=0)
        sq_ref[...] = jnp.sum(y3 * y3, axis=0)


def _bn_lrelu_kernel(y_ref, scale_ref, shift_ref, o_ref):
    # Fused affine (precomputed scale/shift) + LeakyReLU(0.2).
    y = y_ref[...].astype(jnp.float32) * scale_ref[...] + shift_ref[...]
    o_ref[...] = jnp.maximum(y, NEG_SLOPE * y)


def _im2col_reflect_bf16(x, kh, kw, stride):
    """(N,C,H,W) -> (N*OH*OW, C*KH*KW) bf16, reflect-pad=1, col order (c, kh, kw)."""
    xb = x.astype(jnp.bfloat16)
    xp = jnp.pad(xb, ((0, 0), (0, 0), (1, 1), (1, 1)), mode="reflect")
    N, C, Hp, Wp = xp.shape
    oh = (Hp - kh) // stride + 1
    ow = (Wp - kw) // stride + 1
    cols = []
    for i in range(kh):
        for j in range(kw):
            cols.append(xp[:, :, i:i + stride * oh:stride, j:j + stride * ow:stride])
    patches = jnp.stack(cols, axis=0)                  # (KH*KW, N, C, OH, OW)
    patches = jnp.transpose(patches, (1, 3, 4, 2, 0))  # (N, OH, OW, C, KH*KW)
    return patches.reshape(N * oh * ow, C * kh * kw), oh, ow


@functools.partial(
    jax.jit,
    static_argnames=("stride", "y_dtype", "max_tile_m", "max_tile_k", "vmem_limit"))
def _block_forward_impl(x, weight, bias, gamma, beta, *, stride, y_dtype,
                        max_tile_m, max_tile_k, vmem_limit):
    del bias  # exactly cancelled by training-mode BatchNorm mean subtraction
    N = x.shape[0]
    c_out, c_in, kh, kw = weight.shape

    patches, oh, ow = _im2col_reflect_bf16(x, kh, kw, stride)
    m_true, k = patches.shape
    y_itemsize = jnp.dtype(y_dtype).itemsize

    # --- channel width: pad to a multiple of 128 only when it actually helps ---
    if c_out % 128 == 0 or c_out <= 128:
        c_y = c_out                      # true width; last dim == full array dim
    else:
        c_y = _round_up(c_out, 128)      # lane-dense for large misaligned C_out

    # --- K tiling (inner "arbitrary" grid axis) ---
    if k <= max(128, max_tile_k):
        tile_k, k_pad = k, k             # single K step, full-dim block
    else:
        tile_k = max(128, (max_tile_k // 128) * 128)
        k_pad = _round_up(k, tile_k)

    # --- M tiling: as large as the generation's VMEM budget allows ---
    tile_m = max(16, min(max_tile_m, _round_up(m_true, 16)))
    single_buf_w = tile_k * c_y * 2 >= 4 * 2**20   # single-buffer only big weights
    while (_pass1_vmem_bytes(tile_m, tile_k, c_y, y_itemsize, single_buf_w)
           > vmem_limit and tile_m > 128):
        tile_m //= 2
    m_pad = _round_up(m_true, tile_m)
    n_m = m_pad // tile_m
    n_k = k_pad // tile_k

    # Zero-padded rows/columns contribute exactly 0 to y, sum and sum^2.
    patches = jnp.pad(patches, ((0, m_pad - m_true), (0, k_pad - k)))
    w_flat = weight.reshape(c_out, c_in * kh * kw).T.astype(jnp.bfloat16)
    w2 = jnp.zeros((k_pad, c_y), jnp.bfloat16).at[:k, :c_out].set(w_flat)

    w_spec_kwargs = {}
    if single_buf_w:
        # Constant within the M loop; single-buffer to free VMEM for tile_m.
        w_spec_kwargs["pipeline_mode"] = pl.Buffered(1)

    # Pass 1: tiled conv matmul + per-tile partial channel statistics.
    y, psum, psq = pl.pallas_call(
        _conv_stats_kernel,
        grid=(n_m, n_k),
        in_specs=[
            pl.BlockSpec((tile_m, tile_k), lambda mi, ki: (mi, ki)),
            pl.BlockSpec((tile_k, c_y), lambda mi, ki: (ki, 0), **w_spec_kwargs),
        ],
        out_specs=[
            pl.BlockSpec((tile_m, c_y), lambda mi, ki: (mi, 0)),
            pl.BlockSpec((8, c_y), lambda mi, ki: (mi, 0)),
            pl.BlockSpec((8, c_y), lambda mi, ki: (mi, 0)),
        ],
        out_shape=[
            jax.ShapeDtypeStruct((m_pad, c_y), y_dtype),
            jax.ShapeDtypeStruct((8 * n_m, c_y), jnp.float32),
            jax.ShapeDtypeStruct((8 * n_m, c_y), jnp.float32),
        ],
        scratch_shapes=[pltpu.VMEM((tile_m, c_y), jnp.float32)],
        compiler_params=pltpu.CompilerParams(
            dimension_semantics=("parallel", "arbitrary"),
            vmem_limit_bytes=vmem_limit),
        cost_estimate=pl.CostEstimate(
            flops=2 * m_pad * k_pad * c_y,
            transcendentals=0,
            bytes_accessed=(m_pad * k_pad * 2 + k_pad * c_y * 2
                            + m_pad * c_y * y_itemsize + 2 * 8 * n_m * c_y * 4)),
    )(patches, w2)

    # Tiny O(n_m*C) epilogue in XLA: combine partials, finalize scale/shift once.
    # Single-pass var = E[y^2] - mean^2 in f32 (clamped); the per-tile partials
    # make a pairwise/Welford combine easy to add if activations get a large DC
    # offset.
    inv_m = 1.0 / float(m_true)
    mean = jnp.sum(psum, axis=0) * inv_m
    var = jnp.maximum(jnp.sum(psq, axis=0) * inv_m - mean * mean, 0.0)
    g = jnp.zeros((c_y,), jnp.float32).at[:c_out].set(gamma.astype(jnp.float32))
    b = jnp.zeros((c_y,), jnp.float32).at[:c_out].set(beta.astype(jnp.float32))
    inv_std = lax.rsqrt(var + BN_EPS)
    scale = (g * inv_std).reshape(1, c_y)
    shift = (b - mean * g * inv_std).reshape(1, c_y)

    # Pass 2: fused BN affine + LeakyReLU, fully parallel over M tiles.
    out_flat = pl.pallas_call(
        _bn_lrelu_kernel,
        grid=(n_m,),
        in_specs=[
            pl.BlockSpec((tile_m, c_y), lambda mi: (mi, 0)),
            pl.BlockSpec((1, c_y), lambda mi: (0, 0)),
            pl.BlockSpec((1, c_y), lambda mi: (0, 0)),
        ],
        out_specs=pl.BlockSpec((tile_m, c_y), lambda mi: (mi, 0)),
        out_shape=jax.ShapeDtypeStruct((m_pad, c_y), jnp.float32),
        compiler_params=pltpu.CompilerParams(
            dimension_semantics=("parallel",),
            vmem_limit_bytes=vmem_limit),
        cost_estimate=pl.CostEstimate(
            flops=3 * m_pad * c_y,
            transcendentals=0,
            bytes_accessed=m_pad * c_y * (y_itemsize + 4)),
    )(y, scale, shift)

    # (M, C) -> (N, C_out, OH, OW) to match the PyTorch module's NCHW output.
    out = out_flat[:m_true, :c_out].reshape(N, oh, ow, c_out).transpose(0, 3, 1, 2)
    return out


def block_forward(x, weight, bias, gamma, beta, *, stride,
                  y_dtype=jnp.bfloat16, max_tile_m=None, max_tile_k=None):
    """x: (N, Cin, H, W) NCHW; weight: (Cout, Cin, 4, 4) OIHW. Returns f32 NCHW."""
    dflt_tile_m, vmem_limit = _device_defaults()
    if max_tile_m is None:
        max_tile_m = dflt_tile_m
    if max_tile_k is None:
        max_tile_k = 2048
    return _block_forward_impl(
        x, weight, bias, gamma, beta, stride=stride, y_dtype=y_dtype,
        max_tile_m=int(max_tile_m), max_tile_k=int(max_tile_k),
        vmem_limit=int(vmem_limit))


def _reference(x, weight, bias, gamma, beta, stride):
    # Pure-JAX reference; conv inputs cast through bf16 to mirror the kernel's
    # bf16 MXU operands (accumulation stays f32 in both paths).
    xb = x.astype(jnp.bfloat16).astype(jnp.float32)
    wb = weight.astype(jnp.bfloat16).astype(jnp.float32)
    xp = jnp.pad(xb, ((0, 0), (0, 0), (1, 1), (1, 1)), mode="reflect")
    y = lax.conv_general_dilated(
        xp, wb, window_strides=(stride, stride), padding="VALID",
        dimension_numbers=("NCHW", "OIHW", "NCHW"))
    y = y + bias.reshape(1, -1, 1, 1)
    mean = jnp.mean(y, axis=(0, 2, 3), keepdims=True)
    var = jnp.mean((y - mean) ** 2, axis=(0, 2, 3), keepdims=True)
    y = (y - mean) * lax.rsqrt(var + BN_EPS)
    y = y * gamma.reshape(1, -1, 1, 1) + beta.reshape(1, -1, 1, 1)
    return jnp.where(y >= 0.0, y, NEG_SLOPE * y)


if __name__ == "__main__":
    def run_case(name, n, c_in, c_out, hw, stride, tol, **kwargs):
        key = jax.random.PRNGKey(0)
        kx, kw_, kb, kg, kbt = jax.random.split(key, 5)
        x = jax.random.normal(kx, (n, c_in, hw, hw), dtype=jnp.float32)
        weight = jax.random.normal(kw_, (c_out, c_in, 4, 4), dtype=jnp.float32) * 0.1
        bias = jax.random.normal(kb, (c_out,), dtype=jnp.float32) * 0.1
        gamma = 1.0 + 0.1 * jax.random.normal(kg, (c_out,), dtype=jnp.float32)
        beta = 0.1 * jax.random.normal(kbt, (c_out,), dtype=jnp.float32)

        out = jax.block_until_ready(
            block_forward(x, weight, bias, gamma, beta, stride=stride, **kwargs))
        ref = _reference(x, weight, bias, gamma, beta, stride)
        oh = (hw + 2 - 4) // stride + 1
        assert out.shape == (n, c_out, oh, oh), (name, out.shape)
        np.testing.assert_allclose(np.asarray(out), np.asarray(ref),
                                   rtol=tol, atol=tol, err_msg=name)

    # f32 intermediate: tight structural check of the two-pass pipeline.
    run_case("f32_y", 2, 4, 8, 16, 2, 2e-3, y_dtype=jnp.float32)
    # Default fast path (bf16 y): tolerance covers bf16 rounding of the pre-BN
    # activations propagated through the 1/std scaling.
    run_case("bf16_y", 2, 4, 8, 16, 2, 2e-2)
    # Multi-tile M, tiled K (inner "arbitrary" axis), stride 1, odd output size.
    run_case("tiled", 2, 16, 32, 32, 1, 2e-2, max_tile_m=128, max_tile_k=128)
    # C_out > 128 exercises the lane-padding + slice-off path.
    run_case("padded_c", 1, 4, 192, 16, 2, 2e-2)

    print("KERNEL_OK")
</pallas_src>

<mosaic_0001>
module attributes {stable_mosaic.version = 11 : i64} {
  func.func @_conv_stats_kernel(%arg0: i32, %arg1: i32, %arg2: memref<128x64xbf16, #tpu.memory_space<vmem>>, %arg3: memref<64x8xbf16, #tpu.memory_space<vmem>>, %arg4: memref<128x8xf32, #tpu.memory_space<vmem>>, %arg5: memref<8x8xf32, #tpu.memory_space<vmem>>, %arg6: memref<8x8xf32, #tpu.memory_space<vmem>>, %arg7: memref<128x8xf32, #tpu.memory_space<vmem>>) attributes {dimension_semantics = [#tpu.dimension_semantics<parallel>, #tpu.dimension_semantics<arbitrary>], iteration_bounds = array<i64: 1, 1>, scalar_prefetch = 0 : i64, scratch_operands = 1 : i64, tpu.core_type = #tpu.core_type<tc>, window_params = [{transform_indices = @transform_0, window_bounds = array<i64: 128, 64>}, {transform_indices = @transform_1, window_bounds = array<i64: 64, 8>}, {transform_indices = @transform_2, window_bounds = array<i64: 128, 8>}, {transform_indices = @transform_3, window_bounds = array<i64: 8, 8>}, {transform_indices = @transform_4, window_bounds = array<i64: 8, 8>}]} {
    %c0_i32 = arith.constant 0 : i32
    %0 = arith.cmpi eq, %arg1, %c0_i32 : i32
    %1 = arith.extui %0 : i1 to i32
    %c0_i32_0 = arith.constant 0 : i32
    %2 = arith.cmpi ne, %1, %c0_i32_0 : i32
    scf.if %2 {
      %cst_10 = arith.constant 0.000000e+00 : f32
      %12 = vector.broadcast %cst_10 : f32 to vector<128x8xf32>
      %c0_11 = arith.constant 0 : index
      %c0_12 = arith.constant 0 : index
      %13 = vector.load %arg7[%c0_11, %c0_12] : memref<128x8xf32, #tpu.memory_space<vmem>>, vector<128x8xf32>
      tpu.vector_store %arg7[%c0_11, %c0_12], %12 {strides = array<i32>} : memref<128x8xf32, #tpu.memory_space<vmem>>, vector<128x8xf32>,
    } else {
    }
    %c0 = arith.constant 0 : index
    %c0_1 = arith.constant 0 : index
    %3 = vector.load %arg7[%c0, %c0_1] : memref<128x8xf32, #tpu.memory_space<vmem>>, vector<128x8xf32>
    %c0_2 = arith.constant 0 : index
    %c0_3 = arith.constant 0 : index
    %4 = vector.load %arg2[%c0_2, %c0_3] : memref<128x64xbf16, #tpu.memory_space<vmem>>, vector<128x64xbf16>
    %c0_4 = arith.constant 0 : index
    %c0_5 = arith.constant 0 : index
    %5 = vector.load %arg3[%c0_4, %c0_5] : memref<64x8xbf16, #tpu.memory_space<vmem>>, vector<64x8xbf16>
    %cst = arith.constant dense<0.000000e+00> : vector<128x8xf32>
    %6 = tpu.matmul %4, %5, %cst {dimension_numbers = #tpu.dot_dimension_numbers<[1], [0], [0], [1], [0, 0, 1, 1], [], []>} : vector<128x64xbf16>, vector<64x8xbf16>, vector<128x8xf32> -> vector<128x8xf32>
    %7 = arith.addf %3, %6 : vector<128x8xf32>
    %c0_6 = arith.constant 0 : index
    %c0_7 = arith.constant 0 : index
    %8 = vector.load %arg7[%c0_6, %c0_7] : memref<128x8xf32, #tpu.memory_space<vmem>>, vector<128x8xf32>
    tpu.vector_store %arg7[%c0_6, %c0_7], %7 {strides = array<i32>} : memref<128x8xf32, #tpu.memory_space<vmem>>, vector<128x8xf32>,
    %c0_i32_8 = arith.constant 0 : i32
    %9 = arith.cmpi eq, %arg1, %c0_i32_8 : i32
    %10 = arith.extui %9 : i1 to i32
    %c0_i32_9 = arith.constant 0 : i32
    %11 = arith.cmpi ne, %10, %c0_i32_9 : i32
    scf.if %11 {
      %c0_10 = arith.constant 0 : index
      %c0_11 = arith.constant 0 : index
      %12 = vector.load %arg7[%c0_10, %c0_11] : memref<128x8xf32, #tpu.memory_space<vmem>>, vector<128x8xf32>
      %c0_12 = arith.constant 0 : index
      %c0_13 = arith.constant 0 : index
      %13 = vector.load %arg4[%c0_12, %c0_13] : memref<128x8xf32, #tpu.memory_space<vmem>>, vector<128x8xf32>
      tpu.vector_store %arg4[%c0_12, %c0_13], %12 {strides = array<i32>} : memref<128x8xf32, #tpu.memory_space<vmem>>, vector<128x8xf32>,
      %14 = vector.shape_cast %12 : vector<128x8xf32> to vector<16x8x8xf32>
      %cst_14 = arith.constant dense<0.000000e+00> : vector<8x8xf32>
      %15 = vector.multi_reduction <add>, %14, %cst_14 [0] : vector<16x8x8xf32> to vector<8x8xf32>
      %c0_15 = arith.constant 0 : index
      %c0_16 = arith.constant 0 : index
      %16 = vector.load %arg5[%c0_15, %c0_16] : memref<8x8xf32, #tpu.memory_space<vmem>>, vector<8x8xf32>
      tpu.vector_store %arg5[%c0_15, %c0_16], %15 {strides = array<i32>} : memref<8x8xf32, #tpu.memory_space<vmem>>, vector<8x8xf32>,
      %17 = arith.mulf %14, %14 : vector<16x8x8xf32>
      %cst_17 = arith.constant dense<0.000000e+00> : vector<8x8xf32>
      %18 = vector.multi_reduction <add>, %17, %cst_17 [0] : vector<16x8x8xf32> to vector<8x8xf32>
      %c0_18 = arith.constant 0 : index
      %c0_19 = arith.constant 0 : index
      %19 = vector.load %arg6[%c0_18, %c0_19] : memref<8x8xf32, #tpu.memory_space<vmem>>, vector<8x8xf32>
      tpu.vector_store %arg6[%c0_18, %c0_19], %18 {strides = array<i32>} : memref<8x8xf32, #tpu.memory_space<vmem>>, vector<8x8xf32>,
    } else {
    }
    return
  }
  func.func @transform_0(%arg0: i32, %arg1: i32) -> (i32, i32) {
    %c0_i32 = arith.constant 0 : i32
    return %arg0, %arg1 : i32, i32
  }
  func.func @transform_1(%arg0: i32, %arg1: i32) -> (i32, i32) {
    %c0_i32 = arith.constant 0 : i32
    %c0_i32_0 = arith.constant 0 : i32
    return %arg1, %c0_i32 : i32, i32
  }
  func.func @transform_2(%arg0: i32, %arg1: i32) -> (i32, i32) {
    %c0_i32 = arith.constant 0 : i32
    %c0_i32_0 = arith.constant 0 : i32
    return %arg0, %c0_i32 : i32, i32
  }
  func.func @transform_3(%arg0: i32, %arg1: i32) -> (i32, i32) {
    %c0_i32 = arith.constant 0 : i32
    %c0_i32_0 = arith.constant 0 : i32
    return %arg0, %c0_i32 : i32, i32
  }
  func.func @transform_4(%arg0: i32, %arg1: i32) -> (i32, i32) {
    %c0_i32 = arith.constant 0 : i32
    %c0_i32_0 = arith.constant 0 : i32
    return %arg0, %c0_i32 : i32, i32
  }
}

module attributes {stable_mosaic.version = 11 : i64} {
  func.func @_bn_lrelu_kernel(%arg0: i32, %arg1: memref<128x8xf32, #tpu.memory_space<vmem>>, %arg2: memref<1x8xf32, #tpu.memory_space<vmem>>, %arg3: memref<1x8xf32, #tpu.memory_space<vmem>>, %arg4: memref<128x8xf32, #tpu.memory_space<vmem>>) attributes {dimension_semantics = [#tpu.dimension_semantics<parallel>], iteration_bounds = array<i64: 1>, scalar_prefetch = 0 : i64, scratch_operands = 0 : i64, tpu.core_type = #tpu.core_type<tc>, window_params = [{transform_indices = @transform_0, window_bounds = array<i64: 128, 8>}, {pipeline_mode = #tpu.pipeline_mode<synchronous>, transform_indices = @transform_1, window_bounds = array<i64: 1, 8>}, {pipeline_mode = #tpu.pipeline_mode<synchronous>, transform_indices = @transform_2, window_bounds = array<i64: 1, 8>}, {transform_indices = @transform_3, window_bounds = array<i64: 128, 8>}]} {
    %c0 = arith.constant 0 : index
    %c0_0 = arith.constant 0 : index
    %0 = vector.load %arg1[%c0, %c0_0] : memref<128x8xf32, #tpu.memory_space<vmem>>, vector<128x8xf32>
    %c0_1 = arith.constant 0 : index
    %c0_2 = arith.constant 0 : index
    %1 = vector.load %arg2[%c0_1, %c0_2] : memref<1x8xf32, #tpu.memory_space<vmem>>, vector<1x8xf32>
    %2 = vector.broadcast %1 : vector<1x8xf32> to vector<128x8xf32>
    %3 = arith.mulf %0, %2 : vector<128x8xf32>
    %c0_3 = arith.constant 0 : index
    %c0_4 = arith.constant 0 : index
    %4 = vector.load %arg3[%c0_3, %c0_4] : memref<1x8xf32, #tpu.memory_space<vmem>>, vector<1x8xf32>
    %5 = vector.broadcast %4 : vector<1x8xf32> to vector<128x8xf32>
    %6 = arith.addf %3, %5 : vector<128x8xf32>
    %cst = arith.constant 2.000000e-01 : f32
    %7 = vector.broadcast %cst : f32 to vector<128x8xf32>
    %8 = arith.mulf %7, %6 : vector<128x8xf32>
    %9 = arith.maximumf %6, %8 : vector<128x8xf32>
    %c0_5 = arith.constant 0 : index
    %c0_6 = arith.constant 0 : index
    %10 = vector.load %arg4[%c0_5, %c0_6] : memref<128x8xf32, #tpu.memory_space<vmem>>, vector<128x8xf32>
    tpu.vector_store %arg4[%c0_5, %c0_6], %9 {strides = array<i32>} : memref<128x8xf32, #tpu.memory_space<vmem>>, vector<128x8xf32>,
    return
  }
  func.func @transform_0(%arg0: i32) -> (i32, i32) {
    %c0_i32 = arith.constant 0 : i32
    %c0_i32_0 = arith.constant 0 : i32
    return %arg0, %c0_i32 : i32, i32
  }
  func.func @transform_1(%arg0: i32) -> (i32, i32) {
    %c0_i32 = arith.constant 0 : i32
    %c0_i32_0 = arith.constant 0 : i32
    %c0_i32_1 = arith.constant 0 : i32
    return %c0_i32, %c0_i32_0 : i32, i32
  }
  func.func @transform_2(%arg0: i32) -> (i32, i32) {
    %c0_i32 = arith.constant 0 : i32
    %c0_i32_0 = arith.constant 0 : i32
    %c0_i32_1 = arith.constant 0 : i32
    return %c0_i32, %c0_i32_0 : i32, i32
  }
  func.func @transform_3(%arg0: i32) -> (i32, i32) {
    %c0_i32 = arith.constant 0 : i32
    %c0_i32_0 = arith.constant 0 : i32
    return %arg0, %c0_i32 : i32, i32
  }
}

</mosaic_0001>

<llo_original>
// kernel: _block_forward_impl.3
$region0: #{_block_forward_impl.3}
  #allocation0 [shape = 'u32[]', space=smem, size = 0x4, offset = 0x4, fixed_abs, tag = 'smem constant byte address 0x4 - core index']
  #allocation1 [shape = 'u32[72,128]{1,0:T(1,128)}', space=vmem, size = 0x9000, scoped, tag = 'internal scratch']
  %s0 = inlined_call_operand.vmem [shape: f32[128,8], index: 0, kind: input, shape index: {}]
  %s1 = inlined_call_operand.vmem [shape: f32[1,8], index: 1, kind: input, shape index: {}]
  %s2 = inlined_call_operand.vmem [shape: f32[1,8], index: 2, kind: input, shape index: {}]
  %s3 = inlined_call_operand.vmem [shape: f32[128,8], index: 3, kind: output, shape index: {}]
  %s4 = sld [smem:[#allocation0]]
  $region22: #{_block_forward_impl.3} parent=0
    _
  %s6 = ssub.s32 1, %s4
  %s7 = scalar_select 0, %s6, %s4
  // Predicated region
  $region2: #{_block_forward_impl.3} parent=0 // pred_check
    _
  $region3: #{_block_forward_impl.3} parent=0 // pred_check_branch
    %9 = sbr.rel (0) target = $region5
  $region4: #{_block_forward_impl.3} parent=0 // pred_region
    _
  $region5: #{_block_forward_impl.3} parent=0 // pred_fallthru
    _
  // Predicated region
  $region6: #{_block_forward_impl.3} parent=0 // pred_check
    _
  $region7: #{_block_forward_impl.3} parent=0 // pred_check_branch
    %11 = sbr.rel (0) target = $region9
  $region8: #{_block_forward_impl.3} parent=0 // pred_region
    _
  $region9: #{_block_forward_impl.3} parent=0 // pred_fallthru
    _
  // Predicated region
  $region10: #{_block_forward_impl.3} parent=0 // pred_check
    _
  $region11: #{_block_forward_impl.3} parent=0 // pred_check_branch
    %13 = sbr.rel (0) target = $region13
  $region12: #{_block_forward_impl.3} parent=0 // pred_region
    _
  $region13: #{_block_forward_impl.3} parent=0 // pred_fallthru
    _
  %v14 = vld [vmem:[%s0] sm:$0xff]
  %v15 = vld [vmem:[%s0 + $0x8] sm:$0xff]
  %v16 = vld [vmem:[%s0 + $0x10] sm:$0xff]
  %v17 = vld [vmem:[%s0 + $0x18] sm:$0xff]
  %v18 = vld [vmem:[%s0 + $0x20] sm:$0xff]
  %v19 = vld [vmem:[%s0 + $0x28] sm:$0xff]
  %v20 = vld [vmem:[%s0 + $0x30] sm:$0xff]
  %v21 = vld [vmem:[%s0 + $0x38] sm:$0xff]
  %v22 = vld [vmem:[%s0 + $0x40] sm:$0xff]
  %v23 = vld [vmem:[%s0 + $0x48] sm:$0xff]
  %v24 = vld [vmem:[%s0 + $0x50] sm:$0xff]
  %v25 = vld [vmem:[%s0 + $0x58] sm:$0xff]
  %v26 = vld [vmem:[%s0 + $0x60] sm:$0xff]
  %v27 = vld [vmem:[%s0 + $0x68] sm:$0xff]
  %v28 = vld [vmem:[%s0 + $0x70] sm:$0xff]
  %v29 = vld [vmem:[%s0 + $0x78] sm:$0xff]
  %v30 = vld [vmem:[%s1] sm:$0x1]
  %v32 = vperm.slane %v30, 0
  %v34 = vmul.f32 %v14, %v32
  %v35 = vmul.f32 %v15, %v32
  %v36 = vmul.f32 %v16, %v32
  %v37 = vmul.f32 %v17, %v32
  %v38 = vmul.f32 %v18, %v32
  %v39 = vmul.f32 %v19, %v32
  %v40 = vmul.f32 %v20, %v32
  %v41 = vmul.f32 %v21, %v32
  %v42 = vmul.f32 %v22, %v32
  %v43 = vmul.f32 %v23, %v32
  %v44 = vmul.f32 %v24, %v32
  %v45 = vmul.f32 %v25, %v32
  %v46 = vmul.f32 %v26, %v32
  %v47 = vmul.f32 %v27, %v32
  %v48 = vmul.f32 %v28, %v32
  %v49 = vmul.f32 %v29, %v32
  %v50 = vld [vmem:[%s2] sm:$0x1]
  %v52 = vperm.slane %v50, 0
  %v54 = vadd.f32 %v34, %v52
  %v55 = vadd.f32 %v35, %v52
  %v56 = vadd.f32 %v36, %v52
  %v57 = vadd.f32 %v37, %v52
  %v58 = vadd.f32 %v38, %v52
  %v59 = vadd.f32 %v39, %v52
  %v60 = vadd.f32 %v40, %v52
  %v61 = vadd.f32 %v41, %v52
  %v62 = vadd.f32 %v42, %v52
  %v63 = vadd.f32 %v43, %v52
  %v64 = vadd.f32 %v44, %v52
  %v65 = vadd.f32 %v45, %v52
  %v66 = vadd.f32 %v46, %v52
  %v67 = vadd.f32 %v47, %v52
  %v68 = vadd.f32 %v48, %v52
  %v69 = vadd.f32 %v49, %v52
  %v70 = vmul.f32 %v54, 0.2
  %v71 = vmul.f32 %v55, 0.2
  %v72 = vmul.f32 %v56, 0.2
  %v73 = vmul.f32 %v57, 0.2
  %v74 = vmul.f32 %v58, 0.2
  %v75 = vmul.f32 %v59, 0.2
  %v76 = vmul.f32 %v60, 0.2
  %v77 = vmul.f32 %v61, 0.2
  %v78 = vmul.f32 %v62, 0.2
  %v79 = vmul.f32 %v63, 0.2
  %v80 = vmul.f32 %v64, 0.2
  %v81 = vmul.f32 %v65, 0.2
  %v82 = vmul.f32 %v66, 0.2
  %v83 = vmul.f32 %v67, 0.2
  %v84 = vmul.f32 %v68, 0.2
  %v85 = vmul.f32 %v69, 0.2
  %v86 = vmax.f32 %v54, %v70
  %v87 = vmax.f32 %v55, %v71
  %v88 = vmax.f32 %v56, %v72
  %v89 = vmax.f32 %v57, %v73
  %v90 = vmax.f32 %v58, %v74
  %v91 = vmax.f32 %v59, %v75
  %v92 = vmax.f32 %v60, %v76
  %v93 = vmax.f32 %v61, %v77
  %v94 = vmax.f32 %v62, %v78
  %v95 = vmax.f32 %v63, %v79
  %v96 = vmax.f32 %v64, %v80
  %v97 = vmax.f32 %v65, %v81
  %v98 = vmax.f32 %v66, %v82
  %v99 = vmax.f32 %v67, %v83
  %v100 = vmax.f32 %v68, %v84
  %v101 = vmax.f32 %v69, %v85
  %vm102 = vcmask 64512
  %103 = vst.msk [vmem:[%s3] sm:$0xff] %vm102, %v86
  %104 = vst.msk [vmem:[%s3 + $0x8] sm:$0xff] %vm102, %v87
  %105 = vst.msk [vmem:[%s3 + $0x10] sm:$0xff] %vm102, %v88
  %106 = vst.msk [vmem:[%s3 + $0x18] sm:$0xff] %vm102, %v89
  %107 = vst.msk [vmem:[%s3 + $0x20] sm:$0xff] %vm102, %v90
  %108 = vst.msk [vmem:[%s3 + $0x28] sm:$0xff] %vm102, %v91
  %109 = vst.msk [vmem:[%s3 + $0x30] sm:$0xff] %vm102, %v92
  %110 = vst.msk [vmem:[%s3 + $0x38] sm:$0xff] %vm102, %v93
  %111 = vst.msk [vmem:[%s3 + $0x40] sm:$0xff] %vm102, %v94
  %112 = vst.msk [vmem:[%s3 + $0x48] sm:$0xff] %vm102, %v95
  %113 = vst.msk [vmem:[%s3 + $0x50] sm:$0xff] %vm102, %v96
  %114 = vst.msk [vmem:[%s3 + $0x58] sm:$0xff] %vm102, %v97
  %115 = vst.msk [vmem:[%s3 + $0x60] sm:$0xff] %vm102, %v98
  %116 = vst.msk [vmem:[%s3 + $0x68] sm:$0xff] %vm102, %v99
  %117 = vst.msk [vmem:[%s3 + $0x70] sm:$0xff] %vm102, %v100
  %118 = vst.msk [vmem:[%s3 + $0x78] sm:$0xff] %vm102, %v101
  // Predicated region
  $region14: #{_block_forward_impl.3} parent=0 // pred_check
    _
  $region15: #{_block_forward_impl.3} parent=0 // pred_check_branch
    %120 = sbr.rel (0) target = $region17
  $region16: #{_block_forward_impl.3} parent=0 // pred_region
    _
  $region17: #{_block_forward_impl.3} parent=0 // pred_fallthru
    _
  // Predicated region
  $region18: #{_block_forward_impl.3} parent=0 // pred_check
    _
  $region19: #{_block_forward_impl.3} parent=0 // pred_check_branch
    %122 = sbr.rel (0) target = $region21
  $region20: #{_block_forward_impl.3} parent=0 // pred_region
    _
  $region21: #{_block_forward_impl.3} parent=0 // pred_fallthru
    _

// kernel: _block_forward_impl.2
$region0: #{_block_forward_impl.2}
  #allocation0 [shape = 'u32[]', space=smem, size = 0x4, offset = 0x4, fixed_abs, tag = 'smem constant byte address 0x4 - core index']
  #allocation1 [shape = 'u32[72,128]{1,0:T(1,128)}', space=vmem, size = 0x9000, scoped, tag = 'internal scratch']
  #allocation2 [shape = 'f32[128,8]{1,0:T(8,128)}', space=vmem, size = 0x10000, scoped, tag = 'scratch operand']
  %s0 = inlined_call_operand.vmem [shape: bf16[128,64], index: 0, kind: input, shape index: {}]
  %s1 = inlined_call_operand.vmem [shape: bf16[64,8], index: 1, kind: input, shape index: {}]
  %s2 = inlined_call_operand.vmem [shape: f32[128,8], index: 2, kind: output, shape index: {0}]
  %s3 = inlined_call_operand.vmem [shape: f32[8,8], index: 3, kind: output, shape index: {1}]
  %s4 = inlined_call_operand.vmem [shape: f32[8,8], index: 4, kind: output, shape index: {2}]
  %5 = xla_tuple %s2, %s3, %s4
  %s6 = sld [smem:[#allocation0]]
  $region42: #{_block_forward_impl.2} parent=0
    _
  %s8 = ssub.s32 1, %s6
  %s9 = scalar_select 0, %s8, %s6
  // Predicated region
  $region2: #{_block_forward_impl.2} parent=0 // pred_check
    _
  $region3: #{_block_forward_impl.2} parent=0 // pred_check_branch
    %11 = sbr.rel (0) target = $region5
  $region4: #{_block_forward_impl.2} parent=0 // pred_region
    _
  $region5: #{_block_forward_impl.2} parent=0 // pred_fallthru
    _
  // Predicated region
  $region6: #{_block_forward_impl.2} parent=0 // pred_check
    _
  $region7: #{_block_forward_impl.2} parent=0 // pred_check_branch
    %13 = sbr.rel (0) target = $region9
  $region8: #{_block_forward_impl.2} parent=0 // pred_region
    _
  $region9: #{_block_forward_impl.2} parent=0 // pred_fallthru
    _
  %p15 = scmp.eq.s32.totalorder 0, 0
  // Predicated region
  $region10: #{_block_forward_impl.2} parent=0 // pred_check
    %p16 = pneg %p15
  $region11: #{_block_forward_impl.2} parent=0 // pred_check_branch
    %18 = sbr.rel (%p16) target = $region13
  $region12: #{_block_forward_impl.2} parent=0 // pred_region
    %vm19 = vcmask 64512
    %20 = vst.msk [vmem:[#allocation2] sm:$0xff] %vm19, 0.0
    %21 = vst.msk [vmem:[#allocation2 + $0x8] sm:$0xff] %vm19, 0.0
    %22 = vst.msk [vmem:[#allocation2 + $0x10] sm:$0xff] %vm19, 0.0
    %23 = vst.msk [vmem:[#allocation2 + $0x18] sm:$0xff] %vm19, 0.0
    %24 = vst.msk [vmem:[#allocation2 + $0x20] sm:$0xff] %vm19, 0.0
    %25 = vst.msk [vmem:[#allocation2 + $0x28] sm:$0xff] %vm19, 0.0
    %26 = vst.msk [vmem:[#allocation2 + $0x30] sm:$0xff] %vm19, 0.0
    %27 = vst.msk [vmem:[#allocation2 + $0x38] sm:$0xff] %vm19, 0.0
    %28 = vst.msk [vmem:[#allocation2 + $0x40] sm:$0xff] %vm19, 0.0
    %29 = vst.msk [vmem:[#allocation2 + $0x48] sm:$0xff] %vm19, 0.0
    %30 = vst.msk [vmem:[#allocation2 + $0x50] sm:$0xff] %vm19, 0.0
    %31 = vst.msk [vmem:[#allocation2 + $0x58] sm:$0xff] %vm19, 0.0
    %32 = vst.msk [vmem:[#allocation2 + $0x60] sm:$0xff] %vm19, 0.0
    %33 = vst.msk [vmem:[#allocation2 + $0x68] sm:$0xff] %vm19, 0.0
    %34 = vst.msk [vmem:[#allocation2 + $0x70] sm:$0xff] %vm19, 0.0
    %35 = vst.msk [vmem:[#allocation2 + $0x78] sm:$0xff] %vm19, 0.0
  $region13: #{_block_forward_impl.2} parent=0 // pred_fallthru
    _
  %v36 = vld [vmem:[#allocation2] sm:$0xff]
  %v37 = vld [vmem:[#allocation2 + $0x8] sm:$0xff]
  %v38 = vld [vmem:[#allocation2 + $0x10] sm:$0xff]
  %v39 = vld [vmem:[#allocation2 + $0x18] sm:$0xff]
  %v40 = vld [vmem:[#allocation2 + $0x20] sm:$0xff]
  %v41 = vld [vmem:[#allocation2 + $0x28] sm:$0xff]
  %v42 = vld [vmem:[#allocation2 + $0x30] sm:$0xff]
  %v43 = vld [vmem:[#allocation2 + $0x38] sm:$0xff]
  %v44 = vld [vmem:[#allocation2 + $0x40] sm:$0xff]
  %v45 = vld [vmem:[#allocation2 + $0x48] sm:$0xff]
  %v46 = vld [vmem:[#allocation2 + $0x50] sm:$0xff]
  %v47 = vld [vmem:[#allocation2 + $0x58] sm:$0xff]
  %v48 = vld [vmem:[#allocation2 + $0x60] sm:$0xff]
  %v49 = vld [vmem:[#allocation2 + $0x68] sm:$0xff]
  %v50 = vld [vmem:[#allocation2 + $0x70] sm:$0xff]
  %v51 = vld [vmem:[#allocation2 + $0x78] sm:$0xff]
  %v52 = vld [vmem:[%s0] sm:$0xf]
  %v53 = vld [vmem:[%s0 + $0x4] sm:$0xf]
  %v54 = vld [vmem:[%s0 + $0x8] sm:$0xf]
  %v55 = vld [vmem:[%s0 + $0xc] sm:$0xf]
  %v56 = vld [vmem:[%s0 + $0x10] sm:$0xf]
  %v57 = vld [vmem:[%s0 + $0x14] sm:$0xf]
  %v58 = vld [vmem:[%s0 + $0x18] sm:$0xf]
  %v59 = vld [vmem:[%s0 + $0x1c] sm:$0xf]
  %v60 = vld [vmem:[%s0 + $0x20] sm:$0xf]
  %v61 = vld [vmem:[%s0 + $0x24] sm:$0xf]
  %v62 = vld [vmem:[%s0 + $0x28] sm:$0xf]
  %v63 = vld [vmem:[%s0 + $0x2c] sm:$0xf]
  %v64 = vld [vmem:[%s0 + $0x30] sm:$0xf]
  %v65 = vld [vmem:[%s0 + $0x34] sm:$0xf]
  %v66 = vld [vmem:[%s0 + $0x38] sm:$0xf]
  %v67 = vld [vmem:[%s0 + $0x3c] sm:$0xf]
  %v68 = vld [vmem:[%s1] sm:$0xf]
  %v69 = vld [vmem:[%s1 + $0x4] sm:$0xf]
  %v70 = vld [vmem:[%s1 + $0x8] sm:$0xf]
  %v71 = vld [vmem:[%s1 + $0xc] sm:$0xf]
  %v72 = vld [vmem:[%s1 + $0x10] sm:$0xf]
  %v73 = vld [vmem:[%s1 + $0x14] sm:$0xf]
  %v74 = vld [vmem:[%s1 + $0x18] sm:$0xf]
  %v75 = vld [vmem:[%s1 + $0x1c] sm:$0xf]
  %v92 = vunpack.c.l.b16 %v52
  %v93 = vunpack.c.l.b16 %v53
  %v94 = vunpack.c.l.b16 %v54
  %v95 = vunpack.c.l.b16 %v55
  %v96 = vunpack.c.l.b16 %v56
  %v97 = vunpack.c.l.b16 %v57
  %v98 = vunpack.c.l.b16 %v58
  %v99 = vunpack.c.l.b16 %v59
  %v100 = vunpack.c.l.b16 %v60
  %v101 = vunpack.c.l.b16 %v61
  %v102 = vunpack.c.l.b16 %v62
  %v103 = vunpack.c.l.b16 %v63
  %v104 = vunpack.c.l.b16 %v64
  %v105 = vunpack.c.l.b16 %v65
  %v106 = vunpack.c.l.b16 %v66
  %v107 = vunpack.c.l.b16 %v67
  %v108 = vpack.c.b16 %v93, %v92
  %v109 = vpack.c.b16 %v95, %v94
  %v110 = vpack.c.b16 %v97, %v96
  %v111 = vpack.c.b16 %v99, %v98
  %v112 = vpack.c.b16 %v101, %v100
  %v113 = vpack.c.b16 %v103, %v102
  %v114 = vpack.c.b16 %v105, %v104
  %v115 = vpack.c.b16 %v107, %v106
  %v124 = vunpack.c.l.b16 %v68
  %v125 = vunpack.c.l.b16 %v69
  %v126 = vunpack.c.l.b16 %v70
  %v127 = vunpack.c.l.b16 %v71
  %v128 = vunpack.c.l.b16 %v72
  %v129 = vunpack.c.l.b16 %v73
  %v130 = vunpack.c.l.b16 %v74
  %v131 = vunpack.c.l.b16 %v75
  %v132 = vpack.c.b16 %v125, %v124
  %v133 = vpack.c.b16 %v127, %v126
  %v134 = vpack.c.b16 %v129, %v128
  %v135 = vpack.c.b16 %v131, %v130
  %vm140 = vcmask 523264
  %v142 = vsel %vm140, %v108, 0
  %v145 = vsel %vm140, %v109, 0
  %v148 = vsel %vm140, %v110, 0
  %v151 = vsel %vm140, %v111, 0
  %v154 = vsel %vm140, %v112, 0
  %v157 = vsel %vm140, %v113, 0
  %v160 = vsel %vm140, %v114, 0
  %v163 = vsel %vm140, %v115, 0
  %165 = vmatpush.bf16.msra.mxu0 0
  %166 = vmatpush.bf16.msra.mxu0 0
  %167 = vmatpush.bf16.msra.mxu0 0
  %168 = vmatpush.bf16.msra.mxu0 0
  %169 = vmatpush.bf16.msra.mxu0 %v135
  %170 = vmatpush.bf16.msra.mxu0 %v134
  %171 = vmatpush.bf16.msra.mxu0 %v133
  %172 = vmatpush.bf16.msra.mxu0 %v132
  %173 = vmatmul.bf16.gmra.mxu0 %v142
  %v174 = vpop.f32.mrf.mxu0
  %v175 = vadd.f32 0.0, %v174
  %v176 = vpop.f32.mrf.mxu0
  %v177 = vadd.f32 0.0, %v176
  %178 = vmatmul.bf16.gmra.mxu0 %v145
  %v179 = vpop.f32.mrf.mxu0
  %v180 = vadd.f32 0.0, %v179
  %v181 = vpop.f32.mrf.mxu0
  %v182 = vadd.f32 0.0, %v181
  %183 = vmatmul.bf16.gmra.mxu0 %v148
  %v184 = vpop.f32.mrf.mxu0
  %v185 = vadd.f32 0.0, %v184
  %v186 = vpop.f32.mrf.mxu0
  %v187 = vadd.f32 0.0, %v186
  %188 = vmatmul.bf16.gmra.mxu0 %v151
  %v189 = vpop.f32.mrf.mxu0
  %v190 = vadd.f32 0.0, %v189
  %v191 = vpop.f32.mrf.mxu0
  %v192 = vadd.f32 0.0, %v191
  %193 = vmatmul.bf16.gmra.mxu0 %v154
  %v194 = vpop.f32.mrf.mxu0
  %v195 = vadd.f32 0.0, %v194
  %v196 = vpop.f32.mrf.mxu0
  %v197 = vadd.f32 0.0, %v196
  %198 = vmatmul.bf16.gmra.mxu0 %v157
  %v199 = vpop.f32.mrf.mxu0
  %v200 = vadd.f32 0.0, %v199
  %v201 = vpop.f32.mrf.mxu0
  %v202 = vadd.f32 0.0, %v201
  %203 = vmatmul.bf16.gmra.mxu0 %v160
  %v204 = vpop.f32.mrf.mxu0
  %v205 = vadd.f32 0.0, %v204
  %v206 = vpop.f32.mrf.mxu0
  %v207 = vadd.f32 0.0, %v206
  %208 = vmatmul.bf16.gmra.mxu0 %v163
  %v209 = vpop.f32.mrf.mxu0
  %v210 = vadd.f32 0.0, %v209
  %v211 = vpop.f32.mrf.mxu0
  %v212 = vadd.f32 0.0, %v211
  %213 = vdwg.mxu0
  %v214 = vadd.f32 %v36, %v175
  %v215 = vadd.f32 %v37, %v177
  %v216 = vadd.f32 %v38, %v180
  %v217 = vadd.f32 %v39, %v182
  %v218 = vadd.f32 %v40, %v185
  %v219 = vadd.f32 %v41, %v187
  %v220 = vadd.f32 %v42, %v190
  %v221 = vadd.f32 %v43, %v192
  %v222 = vadd.f32 %v44, %v195
  %v223 = vadd.f32 %v45, %v197
  %v224 = vadd.f32 %v46, %v200
  %v225 = vadd.f32 %v47, %v202
  %v226 = vadd.f32 %v48, %v205
  %v227 = vadd.f32 %v49, %v207
  %v228 = vadd.f32 %v50, %v210
  %v229 = vadd.f32 %v51, %v212
  %vm230 = vcmask 64512
  %231 = vst.msk [vmem:[#allocation2] sm:$0xff] %vm230, %v214
  %232 = vst.msk [vmem:[#allocation2 + $0x8] sm:$0xff] %vm230, %v215
  %233 = vst.msk [vmem:[#allocation2 + $0x10] sm:$0xff] %vm230, %v216
  %234 = vst.msk [vmem:[#allocation2 + $0x18] sm:$0xff] %vm230, %v217
  %235 = vst.msk [vmem:[#allocation2 + $0x20] sm:$0xff] %vm230, %v218
  %236 = vst.msk [vmem:[#allocation2 + $0x28] sm:$0xff] %vm230, %v219
  %237 = vst.msk [vmem:[#allocation2 + $0x30] sm:$0xff] %vm230, %v220
  %238 = vst.msk [vmem:[#allocation2 + $0x38] sm:$0xff] %vm230, %v221
  %239 = vst.msk [vmem:[#allocation2 + $0x40] sm:$0xff] %vm230, %v222
  %240 = vst.msk [vmem:[#allocation2 + $0x48] sm:$0xff] %vm230, %v223
  %241 = vst.msk [vmem:[#allocation2 + $0x50] sm:$0xff] %vm230, %v224
  %242 = vst.msk [vmem:[#allocation2 + $0x58] sm:$0xff] %vm230, %v225
  %243 = vst.msk [vmem:[#allocation2 + $0x60] sm:$0xff] %vm230, %v226
  %244 = vst.msk [vmem:[#allocation2 + $0x68] sm:$0xff] %vm230, %v227
  %245 = vst.msk [vmem:[#allocation2 + $0x70] sm:$0xff] %vm230, %v228
  %246 = vst.msk [vmem:[#allocation2 + $0x78] sm:$0xff] %vm230, %v229
  // Predicated region
  $region14: #{_block_forward_impl.2} parent=0 // pred_check
    %p247 = pneg %p15
  $region15: #{_block_forward_impl.2} parent=0 // pred_check_branch
    %249 = sbr.rel (%p247) target = $region17
  $region16: #{_block_forward_impl.2} parent=0 // pred_region
    %v250 = vld [vmem:[#allocation2] sm:$0xff]
    %v251 = vld [vmem:[#allocation2 + $0x8] sm:$0xff]
    %v252 = vld [vmem:[#allocation2 + $0x10] sm:$0xff]
    %v253 = vld [vmem:[#allocation2 + $0x18] sm:$0xff]
    %v254 = vld [vmem:[#allocation2 + $0x20] sm:$0xff]
    %v255 = vld [vmem:[#allocation2 + $0x28] sm:$0xff]
    %v256 = vld [vmem:[#allocation2 + $0x30] sm:$0xff]
    %v257 = vld [vmem:[#allocation2 + $0x38] sm:$0xff]
    %v258 = vld [vmem:[#allocation2 + $0x40] sm:$0xff]
    %v259 = vld [vmem:[#allocation2 + $0x48] sm:$0xff]
    %v260 = vld [vmem:[#allocation2 + $0x50] sm:$0xff]
    %v261 = vld [vmem:[#allocation2 + $0x58] sm:$0xff]
    %v262 = vld [vmem:[#allocation2 + $0x60] sm:$0xff]
    %v263 = vld [vmem:[#allocation2 + $0x68] sm:$0xff]
    %v264 = vld [vmem:[#allocation2 + $0x70] sm:$0xff]
    %v265 = vld [vmem:[#allocation2 + $0x78] sm:$0xff]
    %266 = vst.msk [vmem:[%s2] sm:$0xff] %vm230, %v250
    %267 = vst.msk [vmem:[%s2 + $0x8] sm:$0xff] %vm230, %v251
    %268 = vst.msk [vmem:[%s2 + $0x10] sm:$0xff] %vm230, %v252
    %269 = vst.msk [vmem:[%s2 + $0x18] sm:$0xff] %vm230, %v253
    %270 = vst.msk [vmem:[%s2 + $0x20] sm:$0xff] %vm230, %v254
    %271 = vst.msk [vmem:[%s2 + $0x28] sm:$0xff] %vm230, %v255
    %272 = vst.msk [vmem:[%s2 + $0x30] sm:$0xff] %vm230, %v256
    %273 = vst.msk [vmem:[%s2 + $0x38] sm:$0xff] %vm230, %v257
    %274 = vst.msk [vmem:[%s2 + $0x40] sm:$0xff] %vm230, %v258
    %275 = vst.msk [vmem:[%s2 + $0x48] sm:$0xff] %vm230, %v259
    %276 = vst.msk [vmem:[%s2 + $0x50] sm:$0xff] %vm230, %v260
    %277 = vst.msk [vmem:[%s2 + $0x58] sm:$0xff] %vm230, %v261
    %278 = vst.msk [vmem:[%s2 + $0x60] sm:$0xff] %vm230, %v262
    %279 = vst.msk [vmem:[%s2 + $0x68] sm:$0xff] %vm230, %v263
    %280 = vst.msk [vmem:[%s2 + $0x70] sm:$0xff] %vm230, %v264
    %281 = vst.msk [vmem:[%s2 + $0x78] sm:$0xff] %vm230, %v265
    %v282 = vsel %vm230, %v250, 0.0
    %v283 = vsel %vm230, %v251, 0.0
    %v284 = vadd.f32 %v282, %v283
    %v285 = vsel %vm230, %v252, 0.0
    %v286 = vadd.f32 %v284, %v285
    %v287 = vsel %vm230, %v253, 0.0
    %v288 = vadd.f32 %v286, %v287
    %v289 = vsel %vm230, %v254, 0.0
    %v290 = vadd.f32 %v288, %v289
    %v291 = vsel %vm230, %v255, 0.0
    %v292 = vadd.f32 %v290, %v291
    %v293 = vsel %vm230, %v256, 0.0
    %v294 = vadd.f32 %v292, %v293
    %v295 = vsel %vm230, %v257, 0.0
    %v296 = vadd.f32 %v294, %v295
    %v297 = vsel %vm230, %v258, 0.0
    %v298 = vadd.f32 %v296, %v297
    %v299 = vsel %vm230, %v259, 0.0
    %v300 = vadd.f32 %v298, %v299
    %v301 = vsel %vm230, %v260, 0.0
    %v302 = vadd.f32 %v300, %v301
    %v303 = vsel %vm230, %v261, 0.0
    %v304 = vadd.f32 %v302, %v303
    %v305 = vsel %vm230, %v262, 0.0
    %v306 = vadd.f32 %v304, %v305
    %v307 = vsel %vm230, %v263, 0.0
    %v308 = vadd.f32 %v306, %v307
    %v309 = vsel %vm230, %v264, 0.0
    %v310 = vadd.f32 %v308, %v309
    %v311 = vsel %vm230, %v265, 0.0
    %v312 = vadd.f32 %v310, %v311
    %313 = vst.msk [vmem:[%s3] sm:$0xff] %vm230, %v312
    %v314 = vmul.f32 %v250, %v250
    %v315 = vmul.f32 %v251, %v251
    %v316 = vmul.f32 %v252, %v252
    %v317 = vmul.f32 %v253, %v253
    %v318 = vmul.f32 %v254, %v254
    %v319 = vmul.f32 %v255, %v255
    %v320 = vmul.f32 %v256, %v256
    %v321 = vmul.f32 %v257, %v257
    %v322 = vmul.f32 %v258, %v258
    %v323 = vmul.f32 %v259, %v259
    %v324 = vmul.f32 %v260, %v260
    %v325 = vmul.f32 %v261, %v261
    %v326 = vmul.f32 %v262, %v262
    %v327 = vmul.f32 %v263, %v263
    %v328 = vmul.f32 %v264, %v264
    %v329 = vmul.f32 %v265, %v265
    %v330 = vsel %vm230, %v314, 0.0
    %v331 = vsel %vm230, %v315, 0.0
    %v332 = vadd.f32 %v330, %v331
    %v333 = vsel %vm230, %v316, 0.0
    %v334 = vadd.f32 %v332, %v333
    %v335 = vsel %vm230, %v317, 0.0
    %v336 = vadd.f32 %v334, %v335
    %v337 = vsel %vm230, %v318, 0.0
    %v338 = vadd.f32 %v336, %v337
    %v339 = vsel %vm230, %v319, 0.0
    %v340 = vadd.f32 %v338, %v339
    %v341 = vsel %vm230, %v320, 0.0
    %v342 = vadd.f32 %v340, %v341
    %v343 = vsel %vm230, %v321, 0.0
    %v344 = vadd.f32 %v342, %v343
    %v345 = vsel %vm230, %v322, 0.0
    %v346 = vadd.f32 %v344, %v345
    %v347 = vsel %vm230, %v323, 0.0
    %v348 = vadd.f32 %v346, %v347
    %v349 = vsel %vm230, %v324, 0.0
    %v350 = vadd.f32 %v348, %v349
    %v351 = vsel %vm230, %v325, 0.0
    %v352 = vadd.f32 %v350, %v351
    %v353 = vsel %vm230, %v326, 0.0
    %v354 = vadd.f32 %v352, %v353
    %v355 = vsel %vm230, %v327, 0.0
    %v356 = vadd.f32 %v354, %v355
    %v357 = vsel %vm230, %v328, 0.0
    %v358 = vadd.f32 %v356, %v357
    %v359 = vsel %vm230, %v329, 0.0
    %v360 = vadd.f32 %v358, %v359
    %361 = vst.msk [vmem:[%s4] sm:$0xff] %vm230, %v360
  $region17: #{_block_forward_impl.2} parent=0 // pred_fallthru
    _
  // Predicated region
  $region18: #{_block_forward_impl.2} parent=0 // pred_check
    _
  $region19: #{_block_forward_impl.2} parent=0 // pred_check_branch
    %363 = sbr.rel (0) target = $region21
  $region20: #{_block_forward_impl.2} parent=0 // pred_region
    _
  $region21: #{_block_forward_impl.2} parent=0 // pred_fallthru
    _
  // Predicated region
  $region22: #{_block_forward_impl.2} parent=0 // pred_check
    _
  $region23: #{_block_forward_impl.2} parent=0 // pred_check_branch
    %365 = sbr.rel (0) target = $region25
  $region24: #{_block_forward_impl.2} parent=0 // pred_region
    _
  $region25: #{_block_forward_impl.2} parent=0 // pred_fallthru
    _
  // Predicated region
  $region26: #{_block_forward_impl.2} parent=0 // pred_check
    _
  $region27: #{_block_forward_impl.2} parent=0 // pred_check_branch
    %367 = sbr.rel (0) target = $region29
  $region28: #{_block_forward_impl.2} parent=0 // pred_region
    _
  $region29: #{_block_forward_impl.2} parent=0 // pred_fallthru
    _
  // Predicated region
  $region30: #{_block_forward_impl.2} parent=0 // pred_check
    _
  $region31: #{_block_forward_impl.2} parent=0 // pred_check_branch
    %369 = sbr.rel (0) target = $region33
  $region32: #{_block_forward_impl.2} parent=0 // pred_region
    _
  $region33: #{_block_forward_impl.2} parent=0 // pred_fallthru
    _
  // Predicated region
  $region34: #{_block_forward_impl.2} parent=0 // pred_check
    _
  $region35: #{_block_forward_impl.2} parent=0 // pred_check_branch
    %371 = sbr.rel (0) target = $region37
  $region36: #{_block_forward_impl.2} parent=0 // pred_region
    _
  $region37: #{_block_forward_impl.2} parent=0 // pred_fallthru
    _
  // Predicated region
  $region38: #{_block_forward_impl.2} parent=0 // pred_check
    _
  $region39: #{_block_forward_impl.2} parent=0 // pred_check_branch
    %373 = sbr.rel (0) target = $region41
  $region40: #{_block_forward_impl.2} parent=0 // pred_region
    _
  $region41: #{_block_forward_impl.2} parent=0 // pred_fallthru
    _

</llo_original>
